<compile_context>
chip_gen: v6e
topology: v6e:2x2x1
jax: 0.10.0
libtpu: 0.0.40
codegen_flags: <defaults>
</compile_context>

<pallas_src>
import functools
import math

import jax
import jax.numpy as jnp
from jax import lax
from jax.experimental import pallas as pl
from jax.experimental.pallas import tpu as pltpu

MASKED_BIAS = -10000.0
_MIB = 1024 * 1024


def _fit_tile(dim, pref, align):
    """Largest tile <= pref that divides dim and is a multiple of align,
    falling back to the full dimension (always legal as a block dim)."""
    if dim <= pref:
        return dim
    t = (min(pref, dim) // align) * align
    while t >= align:
        if dim % t == 0:
            return t
        t -= align
    return dim


def _fast_recip(x):
    # EUP approximate reciprocal (free slot) + one Newton-Raphson step.
    r = pl.reciprocal(x, approx=True)
    return r * (2.0 - x * r)


def _compiler_params(semantics, vmem_estimate_bytes):
    # Explicit VMEM budget (v7x has 64 MiB total; default scoped limit 32 MiB).
    limit = int(min(96 * _MIB, max(32 * _MIB, 2 * vmem_estimate_bytes)))
    return pltpu.CompilerParams(dimension_semantics=semantics,
                                vmem_limit_bytes=limit)


# ---------------------------------------------------------------------------
# LayerNorm kernel
# ---------------------------------------------------------------------------
def _layernorm_kernel(x_ref, g_ref, b_ref, o_ref, *, eps):
    x = x_ref[...]
    mu = jnp.mean(x, axis=-1, keepdims=True)
    xc = x - mu
    var = jnp.mean(xc * xc, axis=-1, keepdims=True)
    o_ref[...] = xc * lax.rsqrt(var + eps) * g_ref[...] + b_ref[...]


def layer_norm(x2d, gamma, beta, eps=1e-5):
    M, E = x2d.shape
    tm = _fit_tile(M, 512, 8)
    # v7x megacore: keep the single parallel axis at >= 4 steps when possible.
    if M // tm < 4 and M >= 32:
        tm = _fit_tile(M, max(8, (M // 4) // 8 * 8), 8)
    vmem = 4 * (2 * tm * E + 2 * tm * E + 4 * E)
    return pl.pallas_call(
        functools.partial(_layernorm_kernel, eps=eps),
        out_shape=jax.ShapeDtypeStruct((M, E), jnp.float32),
        grid=(M // tm,),
        in_specs=[pl.BlockSpec((tm, E), lambda i: (i, 0)),
                  pl.BlockSpec((1, E), lambda i: (0, 0)),
                  pl.BlockSpec((1, E), lambda i: (0, 0))],
        out_specs=pl.BlockSpec((tm, E), lambda i: (i, 0)),
        compiler_params=_compiler_params(("parallel",), vmem),
    )(x2d, gamma.reshape(1, E), beta.reshape(1, E))


# ---------------------------------------------------------------------------
# TransposeLinear: y = x @ W + b (+ optional fused gelu and residual add)
# Tiled over (M, N, K); bf16 MXU operands, f32 VMEM accumulator.
# ---------------------------------------------------------------------------
def _linear_epilogue(acc, bias, res, activation):
    y = acc + bias
    if activation == "gelu_tanh":
        y = jax.nn.gelu(y, approximate=True)
    if res is not None:
        y = y + res
    return y


def _linear_kernel(x_ref, w_ref, b_ref, o_ref, acc_ref, *, activation):
    @pl.when(pl.program_id(2) == 0)
    def _():
        acc_ref[...] = jnp.zeros_like(acc_ref[...])

    acc_ref[...] += jnp.dot(x_ref[...].astype(jnp.bfloat16),
                            w_ref[...].astype(jnp.bfloat16),
                            preferred_element_type=jnp.float32)

    @pl.when(pl.program_id(2) == pl.num_programs(2) - 1)
    def _():
        o_ref[...] = _linear_epilogue(acc_ref[...], b_ref[...], None, activation)


def _linear_residual_kernel(x_ref, w_ref, b_ref, r_ref, o_ref, acc_ref, *,
                            activation):
    @pl.when(pl.program_id(2) == 0)
    def _():
        acc_ref[...] = jnp.zeros_like(acc_ref[...])

    acc_ref[...] += jnp.dot(x_ref[...].astype(jnp.bfloat16),
                            w_ref[...].astype(jnp.bfloat16),
                            preferred_element_type=jnp.float32)

    @pl.when(pl.program_id(2) == pl.num_programs(2) - 1)
    def _():
        o_ref[...] = _linear_epilogue(acc_ref[...], b_ref[...], r_ref[...],
                                      activation)


def transpose_linear(x2d, w, b, activation=None, residual=None,
                     tm=512, tn=512, tk=1024):
    M, K = x2d.shape
    Kw, N = w.shape
    assert K == Kw
    tm = _fit_tile(M, tm, 8)
    tn = _fit_tile(N, tn, 128)
    tk = _fit_tile(K, tk, 128)       # GPT-2 K (768/3072) collapses to 1 step
    in_specs = [pl.BlockSpec((tm, tk), lambda i, j, k: (i, k)),
                pl.BlockSpec((tk, tn), lambda i, j, k: (k, j)),
                pl.BlockSpec((1, tn), lambda i, j, k: (0, j))]
    args = [x2d, w, b.reshape(1, N)]
    if residual is not None:
        in_specs.append(pl.BlockSpec((tm, tn), lambda i, j, k: (i, j)))
        args.append(residual)
        kern = functools.partial(_linear_residual_kernel, activation=activation)
    else:
        kern = functools.partial(_linear_kernel, activation=activation)
    vmem = 4 * (2 * (tm * tk + tk * tn + tn) + 2 * tm * tn + tm * tn
                + (2 * tm * tn if residual is not None else 0))
    return pl.pallas_call(
        kern,
        out_shape=jax.ShapeDtypeStruct((M, N), jnp.float32),
        grid=(M // tm, N // tn, K // tk),
        in_specs=in_specs,
        out_specs=pl.BlockSpec((tm, tn), lambda i, j, k: (i, j)),
        scratch_shapes=[pltpu.VMEM((tm, tn), jnp.float32)],
        compiler_params=_compiler_params(
            ("parallel", "parallel", "arbitrary"), vmem),
        cost_estimate=pl.CostEstimate(
            flops=2 * M * N * K,
            transcendentals=(M * N if activation else 0),
            bytes_accessed=4 * (M * K + K * N + M * N + N)),
    )(*args)


# ---------------------------------------------------------------------------
# Flash-style causal attention (no attention-probability output)
#   qkv: (B, S, 3E) fused c_attn output; out: (B, S, E) merged heads.
# ---------------------------------------------------------------------------
def _flash_attn_body(q_ref, k_ref, v_ref, o_ref, m_ref, l_ref, acc_ref, *,
                     num_heads, head_dim, scale, tq, tk, k_base, v_base):
    qi = pl.program_id(1)
    ki = pl.program_id(2)
    H, D = num_heads, head_dim

    @pl.when(ki == 0)
    def _():
        m_ref[...] = jnp.full(m_ref.shape, -jnp.inf, jnp.float32)
        l_ref[...] = jnp.zeros(l_ref.shape, jnp.float32)
        acc_ref[...] = jnp.zeros(acc_ref.shape, jnp.float32)

    # TODO(synk): the rectangular (B, n_q, n_k) grid still visits fully-masked
    # tiles; their DMAs are clamped away and the compute is skipped here. A
    # scalar-prefetched below-diagonal schedule would remove the dead steps.
    @pl.when(ki * tk < (qi + 1) * tq)
    def _():
        row = qi * tq + lax.broadcasted_iota(jnp.int32, (tq, tk), 0)
        col = ki * tk + lax.broadcasted_iota(jnp.int32, (tq, tk), 1)
        causal = col <= row
        for h in range(H):
            q = q_ref[0, :, h * D:(h + 1) * D].astype(jnp.bfloat16)
            k = k_ref[0, :, k_base + h * D:k_base + (h + 1) * D].astype(jnp.bfloat16)
            v = v_ref[0, :, v_base + h * D:v_base + (h + 1) * D].astype(jnp.bfloat16)
            s = lax.dot_general(q, k, (((1,), (1,)), ((), ())),
                                preferred_element_type=jnp.float32) * scale
            s = jnp.where(causal, s, jnp.float32(MASKED_BIAS))
            m_prev = m_ref[:, h:h + 1]
            m_new = jnp.maximum(m_prev, jnp.max(s, axis=-1, keepdims=True))
            alpha = jnp.exp(m_prev - m_new)
            p = jnp.exp(s - m_new)
            l_ref[:, h:h + 1] = (alpha * l_ref[:, h:h + 1]
                                 + jnp.sum(p, axis=-1, keepdims=True))
            acc_ref[:, h * D:(h + 1) * D] = (
                alpha * acc_ref[:, h * D:(h + 1) * D]
                + jnp.dot(p.astype(jnp.bfloat16), v,
                          preferred_element_type=jnp.float32))
            m_ref[:, h:h + 1] = m_new

    @pl.when(ki == pl.num_programs(2) - 1)
    def _():
        inv = _fast_recip(l_ref[...])                         # (tq, H)
        scale_full = jnp.concatenate(
            [jnp.broadcast_to(inv[:, h:h + 1], (tq, D)) for h in range(H)],
            axis=-1)                                          # (tq, E)
        # Single unmasked lane-dense (tq, E) store.
        o_ref[0] = (acc_ref[...] * scale_full).astype(o_ref.dtype)


def flash_attention(qkv, num_heads, head_dim, scale, tq=256, tk=256):
    B, S, threeE = qkv.shape
    E = num_heads * head_dim
    assert threeE == 3 * E
    tq = _fit_tile(S, tq, 8)
    tk = _fit_tile(S, tk, 8)
    n_q, n_k = S // tq, S // tk
    split = (E % 128 == 0)   # E-wide block offsets into the 3E axis need lane alignment

    def last_k(qi):
        # Clamp skipped tiles to the last key tile intersecting the causal
        # region so they do not trigger new DMAs.
        return (qi * tq + tq - 1) // tk

    body = functools.partial(_flash_attn_body, num_heads=num_heads,
                             head_dim=head_dim, scale=scale, tq=tq, tk=tk)
    if split:
        in_specs = [
            pl.BlockSpec((1, tq, E), lambda b, qi, ki: (b, qi, 0)),
            pl.BlockSpec((1, tk, E),
                         lambda b, qi, ki: (b, jnp.minimum(ki, last_k(qi)), 1)),
            pl.BlockSpec((1, tk, E),
                         lambda b, qi, ki: (b, jnp.minimum(ki, last_k(qi)), 2)),
        ]
        args = (qkv, qkv, qkv)

        def kern(q_ref, k_ref, v_ref, o_ref, m_ref, l_ref, acc_ref):
            body(q_ref, k_ref, v_ref, o_ref, m_ref, l_ref, acc_ref,
                 k_base=0, v_base=0)

        vmem = 4 * (2 * (tq * E + 2 * tk * E) + 2 * tq * E
                    + 2 * tq * 128 + tq * E)
    else:
        # Fallback for E not lane-aligned: full 3E-wide blocks.
        in_specs = [
            pl.BlockSpec((1, tq, 3 * E), lambda b, qi, ki: (b, qi, 0)),
            pl.BlockSpec((1, tk, 3 * E),
                         lambda b, qi, ki: (b, jnp.minimum(ki, last_k(qi)), 0)),
        ]
        args = (qkv, qkv)

        def kern(q_ref, kv_ref, o_ref, m_ref, l_ref, acc_ref):
            body(q_ref, kv_ref, kv_ref, o_ref, m_ref, l_ref, acc_ref,
                 k_base=E, v_base=2 * E)

        vmem = 4 * (2 * (tq * 3 * E + tk * 3 * E) + 2 * tq * E
                    + 2 * tq * 128 + tq * E)

    return pl.pallas_call(
        kern,
        out_shape=jax.ShapeDtypeStruct((B, S, E), jnp.float32),
        grid=(B, n_q, n_k),
        in_specs=in_specs,
        out_specs=pl.BlockSpec((1, tq, E), lambda b, qi, ki: (b, qi, 0)),
        scratch_shapes=[pltpu.VMEM((tq, num_heads), jnp.float32),   # m
                        pltpu.VMEM((tq, num_heads), jnp.float32),   # l
                        pltpu.VMEM((tq, E), jnp.float32)],          # acc
        compiler_params=_compiler_params(
            ("parallel", "parallel", "arbitrary"), vmem),
        cost_estimate=pl.CostEstimate(
            flops=2 * B * num_heads * S * S * head_dim,   # ~causal-halved
            transcendentals=B * num_heads * S * S // 2,
            bytes_accessed=4 * (B * S * 3 * E
                                + (B * S * S // (2 * tq)) * 2 * E
                                + B * S * E)),
    )(*args)


# ---------------------------------------------------------------------------
# Causal attention that also emits the (B, H, S, S) probabilities
# (exact PyTorch semantics when attentions are required).
# ---------------------------------------------------------------------------
def _attnw_body(q_ref, k_ref, v_ref, o_ref, w_ref, *, num_heads, head_dim,
                scale, tq, seq_len, k_base, v_base):
    qi = pl.program_id(1)
    H, D = num_heads, head_dim
    row = qi * tq + lax.broadcasted_iota(jnp.int32, (tq, seq_len), 0)
    col = lax.broadcasted_iota(jnp.int32, (tq, seq_len), 1)
    causal = col <= row
    outs = []
    for h in range(H):
        q = q_ref[0, :, h * D:(h + 1) * D].astype(jnp.bfloat16)
        k = k_ref[0, :, k_base + h * D:k_base + (h + 1) * D].astype(jnp.bfloat16)
        v = v_ref[0, :, v_base + h * D:v_base + (h + 1) * D].astype(jnp.bfloat16)
        s = lax.dot_general(q, k, (((1,), (1,)), ((), ())),
                            preferred_element_type=jnp.float32) * scale
        s = jnp.where(causal, s, jnp.float32(MASKED_BIAS))
        m = jnp.max(s, axis=-1, keepdims=True)
        e = jnp.exp(s - m)
        p = e * _fast_recip(jnp.sum(e, axis=-1, keepdims=True))
        w_ref[0, h] = p
        outs.append(jnp.dot(p.astype(jnp.bfloat16), v,
                            preferred_element_type=jnp.float32))
    o_ref[0] = jnp.concatenate(outs, axis=-1)


def attention_with_weights(qkv, num_heads, head_dim, scale, tq=128):
    B, S, threeE = qkv.shape
    E = num_heads * head_dim
    assert threeE == 3 * E
    tq = _fit_tile(S, tq, 8)
    n_q = S // tq
    split = (E % 128 == 0)
    body = functools.partial(_attnw_body, num_heads=num_heads,
                             head_dim=head_dim, scale=scale, tq=tq, seq_len=S)
    # TODO(synk): for very long S the resident (1,S,E) K/V panels should be
    # key-axis tiled (two-pass exact softmax) to fit v7x's 64 MiB VMEM.
    if split:
        in_specs = [pl.BlockSpec((1, tq, E), lambda b, qi: (b, qi, 0)),
                    pl.BlockSpec((1, S, E), lambda b, qi: (b, 0, 1)),
                    pl.BlockSpec((1, S, E), lambda b, qi: (b, 0, 2))]
        args = (qkv, qkv, qkv)

        def kern(q_ref, k_ref, v_ref, o_ref, w_ref):
            body(q_ref, k_ref, v_ref, o_ref, w_ref, k_base=0, v_base=0)

        vmem = 4 * (2 * (tq * E + 2 * S * E) + 2 * (tq * E + num_heads * tq * S))
    else:
        in_specs = [pl.BlockSpec((1, tq, 3 * E), lambda b, qi: (b, qi, 0)),
                    pl.BlockSpec((1, S, 3 * E), lambda b, qi: (b, 0, 0))]
        args = (qkv, qkv)

        def kern(q_ref, kv_ref, o_ref, w_ref):
            body(q_ref, kv_ref, kv_ref, o_ref, w_ref, k_base=E, v_base=2 * E)

        vmem = 4 * (2 * (tq * 3 * E + S * 3 * E)
                    + 2 * (tq * E + num_heads * tq * S))

    return pl.pallas_call(
        kern,
        out_shape=(jax.ShapeDtypeStruct((B, S, E), jnp.float32),
                   jax.ShapeDtypeStruct((B, num_heads, S, S), jnp.float32)),
        grid=(B, n_q),
        in_specs=in_specs,
        out_specs=(pl.BlockSpec((1, tq, E), lambda b, qi: (b, qi, 0)),
                   pl.BlockSpec((1, num_heads, tq, S),
                                lambda b, qi: (b, 0, qi, 0))),
        compiler_params=_compiler_params(("parallel", "parallel"), vmem),
        cost_estimate=pl.CostEstimate(
            flops=4 * B * num_heads * S * S * head_dim,
            transcendentals=B * num_heads * S * S,
            bytes_accessed=4 * (B * S * 3 * E + n_q * B * S * 2 * E
                                + B * S * E + B * num_heads * S * S)),
    )(*args)


# ---------------------------------------------------------------------------
# Module wrappers (eval mode: dropouts are identity)
# ---------------------------------------------------------------------------
class TfmrAttentionPallas:
    def __init__(self, hidden_size, num_heads, scale_attn_weights, key):
        assert hidden_size % num_heads == 0
        self.embed_dim = hidden_size
        self.num_heads = num_heads
        self.head_dim = hidden_size // num_heads
        self.scale_attn_weights = scale_attn_weights
        k1, k2 = jax.random.split(key)
        self.w_attn = 0.02 * jax.random.normal(
            k1, (hidden_size, 3 * hidden_size), jnp.float32)
        self.b_attn = jnp.zeros((3 * hidden_size,), jnp.float32)
        self.w_proj = 0.02 * jax.random.normal(
            k2, (hidden_size, hidden_size), jnp.float32)
        self.b_proj = jnp.zeros((hidden_size,), jnp.float32)

    def __call__(self, hidden_states, residual, layer_past=None,
                 use_cache=False, output_attentions=True):
        if layer_past is not None:
            # TODO(synk): KV-cache decode path (layer_past) not implemented.
            raise NotImplementedError("layer_past is not supported")
        B, S, E = hidden_states.shape
        H, D = self.num_heads, self.head_dim
        qkv = transpose_linear(hidden_states.reshape(B * S, E),
                               self.w_attn, self.b_attn).reshape(B, S, 3 * E)
        scale = (1.0 / math.sqrt(D)) if self.scale_attn_weights else 1.0
        if output_attentions:
            attn_out, attn_w = attention_with_weights(qkv, H, D, scale)
        else:
            attn_out = flash_attention(qkv, H, D, scale)
            attn_w = None
        # c_proj with the residual add fused into the matmul epilogue.
        out = transpose_linear(attn_out.reshape(B * S, E),
                               self.w_proj, self.b_proj,
                               residual=residual.reshape(B * S, E)
                               ).reshape(B, S, E)
        if use_cache:
            k = qkv[..., E:2 * E].reshape(B, S, H, D).transpose(0, 2, 1, 3)
            v = qkv[..., 2 * E:].reshape(B, S, H, D).transpose(0, 2, 1, 3)
            present = (k, v)
        else:
            present = None
        return out, present, attn_w


class TfmrMLPPallas:
    def __init__(self, intermediate_size, hidden_size, key):
        k1, k2 = jax.random.split(key)
        self.w_fc = 0.02 * jax.random.normal(
            k1, (hidden_size, intermediate_size), jnp.float32)
        self.b_fc = jnp.zeros((intermediate_size,), jnp.float32)
        self.w_proj = 0.02 * jax.random.normal(
            k2, (intermediate_size, hidden_size), jnp.float32)
        self.b_proj = jnp.zeros((hidden_size,), jnp.float32)

    def __call__(self, hidden_states, residual):
        B, S, E = hidden_states.shape
        # TODO(synk): torch F.gelu is exact (erf); the fused kernel uses the
        # tanh approximation to stay on supported EUP transcendentals.
        h = transpose_linear(hidden_states.reshape(B * S, E), self.w_fc,
                             self.b_fc, activation="gelu_tanh")
        h = transpose_linear(h, self.w_proj, self.b_proj,
                             residual=residual.reshape(B * S, E))
        return h.reshape(B, S, E)


class TfmrBlockPallas:
    def __init__(self, hidden_size, num_heads, inner_dim, eps, key):
        k1, k2 = jax.random.split(key)
        self.eps = eps
        self.ln1_g = jnp.ones((hidden_size,), jnp.float32)
        self.ln1_b = jnp.zeros((hidden_size,), jnp.float32)
        self.ln2_g = jnp.ones((hidden_size,), jnp.float32)
        self.ln2_b = jnp.zeros((hidden_size,), jnp.float32)
        self.attn = TfmrAttentionPallas(hidden_size, num_heads, True, k1)
        self.mlp = TfmrMLPPallas(inner_dim, hidden_size, k2)

    def __call__(self, hidden_states, use_cache=False, output_attentions=True):
        B, S, E = hidden_states.shape
        x = layer_norm(hidden_states.reshape(B * S, E), self.ln1_g, self.ln1_b,
                       self.eps).reshape(B, S, E)
        # Residual add is fused into the attention c_proj epilogue.
        h2, present, attn_w = self.attn(
            x, residual=hidden_states, use_cache=use_cache,
            output_attentions=output_attentions)
        x = layer_norm(h2.reshape(B * S, E), self.ln2_g, self.ln2_b,
                       self.eps).reshape(B, S, E)
        # Residual add is fused into the MLP c_proj epilogue.
        hidden_states = self.mlp(x, residual=h2)
        return hidden_states, present, attn_w


class TfmrModelPallas:
    def __init__(self, vocab_size, hidden_size, num_heads, num_layers,
                 max_position_embeddings, n_inner=None, eps=1e-5, key=None):
        self.embed_dim = hidden_size
        self.eps = eps
        inner_dim = n_inner if n_inner is not None else 4 * hidden_size
        if key is None:
            key = jax.random.PRNGKey(0)
        keys = jax.random.split(key, num_layers + 2)
        self.wte = jax.random.normal(keys[0], (vocab_size, hidden_size),
                                     jnp.float32)
        self.wpe = jax.random.normal(keys[1],
                                     (max_position_embeddings, hidden_size),
                                     jnp.float32)
        self.h = [TfmrBlockPallas(hidden_size, num_heads, inner_dim, eps,
                                  keys[2 + i]) for i in range(num_layers)]
        self.lnf_g = jnp.ones((hidden_size,), jnp.float32)
        self.lnf_b = jnp.zeros((hidden_size,), jnp.float32)

    def __call__(self, input_ids, past_key_values=None, use_cache=None,
                 output_attentions=True):
        if past_key_values is not None:
            # TODO(synk): past_key_values decode path not implemented.
            raise NotImplementedError("past_key_values is not supported")
        B, S = input_ids.shape
        E = self.embed_dim
        # TODO(synk): embedding gather (wte/wpe index-select) left to XLA.
        inputs_embeds = jnp.take(self.wte, input_ids, axis=0)
        position_embeds = self.wpe[:S][None, :, :]
        hidden_states = inputs_embeds + position_embeds

        presents = () if use_cache else None
        all_hidden_states = ()
        all_self_attentions = ()
        for block in self.h:
            all_hidden_states += (hidden_states,)
            hidden_states, present, attn_w = block(
                hidden_states, use_cache=bool(use_cache),
                output_attentions=output_attentions)
            if use_cache:
                presents += (present,)
            all_self_attentions += (attn_w,)
        hidden_states = layer_norm(hidden_states.reshape(B * S, E),
                                   self.lnf_g, self.lnf_b,
                                   self.eps).reshape(B, S, E)
        all_hidden_states += (hidden_states,)
        return {"last_hidden_state": hidden_states,
                "past_key_values": presents,
                "hidden_states": all_hidden_states,
                "attentions": all_self_attentions,
                "cross_attentions": ()}


# ---------------------------------------------------------------------------
# Pure-JAX reference for self-check
# ---------------------------------------------------------------------------
def reference_forward(model, input_ids):
    B, S = input_ids.shape
    E = model.embed_dim

    def ln(x, g, b, eps):
        mu = x.mean(-1, keepdims=True)
        var = ((x - mu) ** 2).mean(-1, keepdims=True)
        return (x - mu) / jnp.sqrt(var + eps) * g + b

    h = jnp.take(model.wte, input_ids, axis=0) + model.wpe[:S][None]
    hs, atts = (), ()
    mask = jnp.tril(jnp.ones((S, S), dtype=bool))
    for blk in model.h:
        hs += (h,)
        res = h
        y = ln(h, blk.ln1_g, blk.ln1_b, blk.eps)
        a = blk.attn
        H, D = a.num_heads, a.head_dim
        qkv = (y.reshape(B * S, E) @ a.w_attn + a.b_attn).reshape(B, S, 3 * E)
        q, k, v = jnp.split(qkv, 3, axis=-1)
        sh = lambda t: t.reshape(B, S, H, D).transpose(0, 2, 1, 3)
        q, k, v = sh(q), sh(k), sh(v)
        s = jnp.einsum("bhqd,bhkd->bhqk", q, k)
        if a.scale_attn_weights:
            s = s / math.sqrt(D)
        s = jnp.where(mask, s, MASKED_BIAS)
        p = jax.nn.softmax(s, axis=-1)
        atts += (p,)
        o = jnp.einsum("bhqk,bhkd->bhqd", p, v)
        o = o.transpose(0, 2, 1, 3).reshape(B * S, E)
        o = (o @ a.w_proj + a.b_proj).reshape(B, S, E)
        h = o + res
        res = h
        y = ln(h, blk.ln2_g, blk.ln2_b, blk.eps)
        m = blk.mlp
        z = jax.nn.gelu(y.reshape(B * S, E) @ m.w_fc + m.b_fc, approximate=True)
        z = (z @ m.w_proj + m.b_proj).reshape(B, S, E)
        h = res + z
    h = ln(h, model.lnf_g, model.lnf_b, model.eps)
    hs += (h,)
    return h, hs, atts


if __name__ == "__main__":
    vocab, max_pos = 50, 32
    # hidden=128 keeps the lane-aligned Q/K/V split path exercised.
    B, S, E, H, L = 2, 16, 128, 4, 2

    key = jax.random.PRNGKey(0)
    k_model, k_ids = jax.random.split(key)
    model = TfmrModelPallas(vocab_size=vocab, hidden_size=E, num_heads=H,
                            num_layers=L, max_position_embeddings=max_pos,
                            key=k_model)
    input_ids = jax.random.randint(k_ids, (B, S), 0, vocab, dtype=jnp.int32)

    # Path 1: full PyTorch semantics (attention probabilities returned).
    out = model(input_ids, use_cache=False, output_attentions=True)
    jax.block_until_ready((out["last_hidden_state"], out["hidden_states"],
                           out["attentions"]))

    ref_last, ref_hs, ref_att = reference_forward(model, input_ids)
    # Tolerance accounts for intentional bf16 MXU operands in the kernels.
    TOL = dict(atol=2e-2, rtol=2e-2)
    assert jnp.allclose(out["last_hidden_state"], ref_last, **TOL)
    for got, want in zip(out["hidden_states"], ref_hs):
        assert jnp.allclose(got, want, **TOL)
    for got, want in zip(out["attentions"], ref_att):
        assert jnp.allclose(got, want, **TOL)
    assert out["past_key_values"] is None
    assert len(out["hidden_states"]) == L + 1
    assert len(out["attentions"]) == L

    # Path 2: flash-attention fast path (no probability writeback).
    out_fast = model(input_ids, use_cache=False, output_attentions=False)
    jax.block_until_ready(out_fast["last_hidden_state"])
    assert jnp.allclose(out_fast["last_hidden_state"], ref_last, **TOL)

    print("KERNEL_OK")
</pallas_src>

<mosaic_0001>
module attributes {stable_mosaic.version = 11 : i64} {
  func.func @_layernorm_kernel(%arg0: i32, %arg1: memref<8x128xf32, #tpu.memory_space<vmem>>, %arg2: memref<1x128xf32, #tpu.memory_space<vmem>>, %arg3: memref<1x128xf32, #tpu.memory_space<vmem>>, %arg4: memref<8x128xf32, #tpu.memory_space<vmem>>) attributes {dimension_semantics = [#tpu.dimension_semantics<parallel>], iteration_bounds = array<i64: 4>, scalar_prefetch = 0 : i64, scratch_operands = 0 : i64, tpu.core_type = #tpu.core_type<tc>, window_params = [{transform_indices = @transform_0, window_bounds = array<i64: 8, 128>}, {pipeline_mode = #tpu.pipeline_mode<synchronous>, transform_indices = @transform_1, window_bounds = array<i64: 1, 128>}, {pipeline_mode = #tpu.pipeline_mode<synchronous>, transform_indices = @transform_2, window_bounds = array<i64: 1, 128>}, {transform_indices = @transform_3, window_bounds = array<i64: 8, 128>}]} {
    %c0 = arith.constant 0 : index
    %c0_0 = arith.constant 0 : index
    %0 = vector.load %arg1[%c0, %c0_0] : memref<8x128xf32, #tpu.memory_space<vmem>>, vector<8x128xf32>
    %cst = arith.constant dense<0.000000e+00> : vector<8xf32>
    %1 = vector.multi_reduction <add>, %0, %cst [1] : vector<8x128xf32> to vector<8xf32>
    %2 = vector.shape_cast %1 : vector<8xf32> to vector<8x1xf32>
    %cst_1 = arith.constant 1.280000e+02 : f32
    %3 = vector.broadcast %cst_1 : f32 to vector<8x1xf32>
    %4 = arith.divf %2, %3 : vector<8x1xf32>
    %5 = vector.broadcast %4 : vector<8x1xf32> to vector<8x128xf32>
    %6 = arith.subf %0, %5 : vector<8x128xf32>
    %7 = arith.mulf %6, %6 : vector<8x128xf32>
    %cst_2 = arith.constant dense<0.000000e+00> : vector<8xf32>
    %8 = vector.multi_reduction <add>, %7, %cst_2 [1] : vector<8x128xf32> to vector<8xf32>
    %9 = vector.shape_cast %8 : vector<8xf32> to vector<8x1xf32>
    %cst_3 = arith.constant 1.280000e+02 : f32
    %10 = vector.broadcast %cst_3 : f32 to vector<8x1xf32>
    %11 = arith.divf %9, %10 : vector<8x1xf32>
    %cst_4 = arith.constant 9.99999974E-6 : f32
    %12 = vector.broadcast %cst_4 : f32 to vector<8x1xf32>
    %13 = arith.addf %11, %12 : vector<8x1xf32>
    %14 = math.rsqrt %13 : vector<8x1xf32>
    %15 = vector.broadcast %14 : vector<8x1xf32> to vector<8x128xf32>
    %16 = arith.mulf %6, %15 : vector<8x128xf32>
    %c0_5 = arith.constant 0 : index
    %c0_6 = arith.constant 0 : index
    %17 = vector.load %arg2[%c0_5, %c0_6] : memref<1x128xf32, #tpu.memory_space<vmem>>, vector<1x128xf32>
    %18 = vector.broadcast %17 : vector<1x128xf32> to vector<8x128xf32>
    %19 = arith.mulf %16, %18 : vector<8x128xf32>
    %c0_7 = arith.constant 0 : index
    %c0_8 = arith.constant 0 : index
    %20 = vector.load %arg3[%c0_7, %c0_8] : memref<1x128xf32, #tpu.memory_space<vmem>>, vector<1x128xf32>
    %21 = vector.broadcast %20 : vector<1x128xf32> to vector<8x128xf32>
    %22 = arith.addf %19, %21 : vector<8x128xf32>
    %c0_9 = arith.constant 0 : index
    %c0_10 = arith.constant 0 : index
    %23 = vector.load %arg4[%c0_9, %c0_10] : memref<8x128xf32, #tpu.memory_space<vmem>>, vector<8x128xf32>
    tpu.vector_store %arg4[%c0_9, %c0_10], %22 {strides = array<i32>} : memref<8x128xf32, #tpu.memory_space<vmem>>, vector<8x128xf32>,
    return
  }
  func.func @transform_0(%arg0: i32) -> (i32, i32) {
    %c0_i32 = arith.constant 0 : i32
    %c0_i32_0 = arith.constant 0 : i32
    return %arg0, %c0_i32 : i32, i32
  }
  func.func @transform_1(%arg0: i32) -> (i32, i32) {
    %c0_i32 = arith.constant 0 : i32
    %c0_i32_0 = arith.constant 0 : i32
    %c0_i32_1 = arith.constant 0 : i32
    return %c0_i32, %c0_i32_0 : i32, i32
  }
  func.func @transform_2(%arg0: i32) -> (i32, i32) {
    %c0_i32 = arith.constant 0 : i32
    %c0_i32_0 = arith.constant 0 : i32
    %c0_i32_1 = arith.constant 0 : i32
    return %c0_i32, %c0_i32_0 : i32, i32
  }
  func.func @transform_3(%arg0: i32) -> (i32, i32) {
    %c0_i32 = arith.constant 0 : i32
    %c0_i32_0 = arith.constant 0 : i32
    return %arg0, %c0_i32 : i32, i32
  }
}

</mosaic_0001>

<llo_original>
// kernel: tpu_custom_call.1
$region0: #{tpu_custom_call.1}
  #allocation0 [shape = 'u32[]', space=smem, size = 0x4, offset = 0x4, fixed_abs, tag = 'smem constant byte address 0x4 - core index']
  #allocation1 [shape = 'u32[144,128]{1,0:T(1,128)}', space=vmem, size = 0x12000, scoped, tag = 'internal scratch']
  %s0 = inlined_call_operand.hbm [shape: f32[32,128], index: 0, kind: input, shape index: {}]
  %s1 = inlined_call_operand.vmem [shape: f32[1,128], index: 1, kind: input, shape index: {}]
  %s2 = inlined_call_operand.vmem [shape: f32[1,128], index: 2, kind: input, shape index: {}]
  %s3 = inlined_call_operand.hbm [shape: f32[32,128], index: 3, kind: output, shape index: {}]
  %s4 = sld [smem:[#allocation0]]
  $region49: #{tpu_custom_call.1} parent=0
    _
  %s6 = ssub.s32 1, %s4
  %s7 = scalar_select 0, %s6, %s4
  $region1: #{tpu_custom_call.1} parent=0
    #allocation2 [shape = 'u8[8192]{0}', space=vmem, size = 0x2000, scoped, tag = 'input window, operand 0']
    #allocation3 [shape = 's32[2]{0}', space=sflag, size = 0x8, scoped, tag = 'scoped memory for tpu_custom_call.1']
    #allocation4 [shape = 's32[2]{0}', space=sflag, size = 0x8, scoped, tag = 'scoped memory for tpu_custom_call.1']
    #allocation5 [shape = 'u8[8192]{0}', space=vmem, size = 0x2000, scoped, tag = 'output window, operand 0']
    %8 = vsyncpa [#allocation3], 0
    %s9 = scalar_lea.sflag [#allocation3], 1
    %10 = vsyncpa %s9, 0
    %11 = vsyncpa [#allocation4], 0
    %s12 = scalar_lea.sflag [#allocation4], 1
    %13 = vsyncpa %s12, 0
    loop: start=0, step=1, limit=6
    $region2: #{tpu_custom_call.1} parent=1 // loop_pre_header
      _
    $region3: #{tpu_custom_call.1} parent=1 // loop_header
      %s15 = sphi 0, %s19
      %p16 = scmp.ge.s32.totalorder %s15, 6
      %s25 = sphi 0, %s27
      %s28 = sphi 0, %s25
      %s29 = sphi 0, %s28
      %s45 = sphi 0, %s29
      %s49 = sphi 0, %s49
      %s51 = sphi 0, %s49
      %s52 = sphi 0, %s51
      %s66 = sphi 0, %s52
      %s70 = sphi 0, %s70
      %s72 = sphi 0, %s70
      %s73 = sphi 0, %s72
      %s87 = sphi 0, %s73
      %s93 = sphi 0, %s95
      %s96 = sphi 0, %s93
      %s97 = sphi 0, %s96
      %s113 = sphi 0, %s97
    $region4: #{tpu_custom_call.1} parent=1 // loop_header_branch
      %18 = sbr.rel (%p16) target = $region8
    $region5: #{tpu_custom_call.1} parent=1 // loop_body
      %s20 = ssub.s32 %s15, 1
      %s21 = ssub.s32 %s15, 2
      %s22 = sadd.s32 %s15, 1
      %s23 = ssub.s32 %s15, %s22
      %p24 = scmp.eq.s32.totalorder %s23, 0
      %s26 = sadd.s32 %s25, 1
      %s27 = scalar_select %p24, %s25, %s26
      %p30 = pneg %p24
      %p31 = scmp.eq.s32.totalorder %s15, 3
      %p32 = por %p30, %p31
      %p33 = scmp.ne.s32.totalorder %s25, %s28
      %p34 = scmp.eq.s32.totalorder %s15, 0
      %p35 = por %p33, %p34
      %p36 = scmp.ne.s32.totalorder %s25, %s28
      %p37 = scmp.eq.s32.totalorder %s20, 3
      %p38 = por %p36, %p37
      %p39 = scmp.ne.s32.totalorder %s28, %s29
      %p40 = scmp.eq.s32.totalorder %s20, 0
      %p41 = por %p39, %p40
      %p42 = scmp.ne.s32.totalorder %s28, %s29
      %p43 = scmp.eq.s32.totalorder %s21, 3
      %p44 = por %p42, %p43
      %p46 = scmp.ne.s32.totalorder %s29, %s45
      %p47 = scmp.eq.s32.totalorder %s21, 0
      %p48 = por %p46, %p47
      %s50 = sadd.s32 %s49, 1
      %p53 = scmp.eq.s32.totalorder %s15, 3
      %p54 = scmp.ne.s32.totalorder %s49, %s51
      %p55 = scmp.eq.s32.totalorder %s15, 0
      %p56 = por %p54, %p55
      %p57 = scmp.ne.s32.totalorder %s49, %s51
      %p58 = scmp.eq.s32.totalorder %s20, 3
      %p59 = por %p57, %p58
      %p60 = scmp.ne.s32.totalorder %s51, %s52
      %p61 = scmp.eq.s32.totalorder %s20, 0
      %p62 = por %p60, %p61
      %p63 = scmp.ne.s32.totalorder %s51, %s52
      %p64 = scmp.eq.s32.totalorder %s21, 3
      %p65 = por %p63, %p64
      %p67 = scmp.ne.s32.totalorder %s52, %s66
      %p68 = scmp.eq.s32.totalorder %s21, 0
      %p69 = por %p67, %p68
      %s71 = sadd.s32 %s70, 1
      %p74 = scmp.eq.s32.totalorder %s15, 3
      %p75 = scmp.ne.s32.totalorder %s70, %s72
      %p76 = scmp.eq.s32.totalorder %s15, 0
      %p77 = por %p75, %p76
      %p78 = scmp.ne.s32.totalorder %s70, %s72
      %p79 = scmp.eq.s32.totalorder %s20, 3
      %p80 = por %p78, %p79
      %p81 = scmp.ne.s32.totalorder %s72, %s73
      %p82 = scmp.eq.s32.totalorder %s20, 0
      %p83 = por %p81, %p82
      %p84 = scmp.ne.s32.totalorder %s72, %s73
      %p85 = scmp.eq.s32.totalorder %s21, 3
      %p86 = por %p84, %p85
      %p88 = scmp.ne.s32.totalorder %s73, %s87
      %p89 = scmp.eq.s32.totalorder %s21, 0
      %p90 = por %p88, %p89
      %s91 = ssub.s32 %s15, %s22
      %p92 = scmp.eq.s32.totalorder %s91, 0
      %s94 = sadd.s32 %s93, 1
      %s95 = scalar_select %p92, %s93, %s94
      %p98 = pneg %p92
      %p99 = scmp.eq.s32.totalorder %s15, 3
      %p100 = por %p98, %p99
      %p101 = scmp.ne.s32.totalorder %s93, %s96
      %p102 = scmp.eq.s32.totalorder %s15, 0
      %p103 = por %p101, %p102
      %p104 = scmp.ne.s32.totalorder %s93, %s96
      %p105 = scmp.eq.s32.totalorder %s20, 3
      %p106 = por %p104, %p105
      %p107 = scmp.ne.s32.totalorder %s96, %s97
      %p108 = scmp.eq.s32.totalorder %s20, 0
      %p109 = por %p107, %p108
      %p110 = scmp.ne.s32.totalorder %s96, %s97
      %p111 = scmp.eq.s32.totalorder %s21, 3
      %p112 = por %p110, %p111
      %p114 = scmp.ne.s32.totalorder %s97, %s113
      %p115 = scmp.eq.s32.totalorder %s21, 0
      %p116 = por %p114, %p115
      %p117 = scmp.le.s32.totalorder 1, %s15
      %p118 = scmp.lt.s32.totalorder %s15, 5
      %p119 = pnand %p117, %p118
      %p120 = pneg %p119
      // Predicated region
      $region9: #{tpu_custom_call.1} parent=5 // pred_check
        _
      $region10: #{tpu_custom_call.1} parent=5 // pred_check_branch
        %122 = sbr.rel (%p119) target = $region12
      $region11: #{tpu_custom_call.1} parent=5 // pred_region
        %s123 = ssub.s32 %s15, 1
        // Predicated region
        $region13: #{tpu_custom_call.1} parent=11 // pred_check
          %p124 = pneg %p62
        $region14: #{tpu_custom_call.1} parent=11 // pred_check_branch
          %126 = sbr.rel (%p124) target = $region16
        $region15: #{tpu_custom_call.1} parent=11 // pred_region
          _
        $region16: #{tpu_custom_call.1} parent=11 // pred_fallthru
          _
        // Predicated region
        $region17: #{tpu_custom_call.1} parent=11 // pred_check
          %p127 = pneg %p83
        $region18: #{tpu_custom_call.1} parent=11 // pred_check_branch
          %129 = sbr.rel (%p127) target = $region20
        $region19: #{tpu_custom_call.1} parent=11 // pred_region
          _
        $region20: #{tpu_custom_call.1} parent=11 // pred_fallthru
          _
      $region12: #{tpu_custom_call.1} parent=5 // pred_fallthru
        _
      %p130 = scmp.lt.s32.totalorder %s15, 4
      // Predicated region
      $region21: #{tpu_custom_call.1} parent=5 // pred_check
        %p131 = pneg %p130
      $region22: #{tpu_custom_call.1} parent=5 // pred_check_branch
        %133 = sbr.rel (%p131) target = $region24
      $region23: #{tpu_custom_call.1} parent=5 // pred_region
        // Predicated region
        $region25: #{tpu_custom_call.1} parent=23 // pred_check
          %p134 = pneg %p35
        $region26: #{tpu_custom_call.1} parent=23 // pred_check_branch
          %136 = sbr.rel (%p134) target = $region28
        $region27: #{tpu_custom_call.1} parent=23 // pred_region
          %s137 = sand.u32 %s25, 1
          %s138 = scalar_lea.sflag [#allocation3], %s137
          %s139 = sand.u32 %s25, 1
          %s140 = smul.addr %s139, 8
          %s141 = scalar_lea.vmem [#allocation2], %s140
          %s143 = ssub.s32 128, 128
          %144 = vsyncadd %s138, %s143
          %s145 = smul.addr %s15, 128
          %s146 = scalar_lea.hbm %s0, %s145
          %s148 = sshll.u32 %s141, 4
          %s149 = int_to_ptr.vmem [resolvable:$true] %s148
          %151 = dma.hbm_to_vmem [thread:$0]  %s146, 128, %s149, %s138
        $region28: #{tpu_custom_call.1} parent=23 // pred_fallthru
          _
      $region24: #{tpu_custom_call.1} parent=5 // pred_fallthru
        _
      %p152 = scmp.le.s32.totalorder 1, %s15
      %p153 = scmp.lt.s32.totalorder %s15, 5
      %p154 = pnand %p152, %p153
      %p155 = pneg %p154
      // Predicated region
      $region29: #{tpu_custom_call.1} parent=5 // pred_check
        _
      $region30: #{tpu_custom_call.1} parent=5 // pred_check_branch
        %157 = sbr.rel (%p154) target = $region32
      $region31: #{tpu_custom_call.1} parent=5 // pred_region
        %s158 = ssub.s32 %s15, 1
        %s159 = sand.u32 %s28, 1
        %s160 = scalar_lea.sflag [#allocation3], %s159
        %s161 = sand.u32 %s28, 1
        %s162 = smul.addr %s161, 8
        %s163 = scalar_lea.vmem [#allocation2], %s162
        // Predicated region
        $region33: #{tpu_custom_call.1} parent=31 // pred_check
          %p164 = pneg %p41
        $region34: #{tpu_custom_call.1} parent=31 // pred_check_branch
          %166 = sbr.rel (%p164) target = $region36
        $region35: #{tpu_custom_call.1} parent=31 // pred_region
          %167 = dma.done %s160, 128
        $region36: #{tpu_custom_call.1} parent=31 // pred_fallthru
          _
        %s168 = sand.u32 %s28, 1
        %s169 = scalar_lea.sflag [#allocation3], %s168
        %s170 = sand.u32 %s28, 1
        %s171 = smul.addr %s170, 8
        %s172 = scalar_lea.vmem [#allocation2], %s171
        %p173 = pneg %p41
        %p174 = pneg %p38
        %p175 = pneg %p62
        %p176 = pneg %p59
        %p177 = pneg %p83
        %p178 = pneg %p80
        %p179 = pneg %p109
        %p180 = pneg %p106
        %s181 = sand.u32 %s96, 1
        %s182 = scalar_lea.sflag [#allocation4], %s181
        %s183 = sand.u32 %s96, 1
        %s184 = smul.addr %s183, 8
        %s185 = scalar_lea.vmem [#allocation5], %s184
        %v186 = vld [vmem:[%s163] sm:$0xff]
        %187 = vadd.xlane.f32.xlu0 %v186
        %v188 = vpop.xlane.xlu0 %187
        %v189 = vrcp.pop 128.0
        %v190 = vmul.f32 %v188, %v189
        %v191 = vsub.f32 %v186, %v190
        %v192 = vmul.f32 %v191, %v191
        %193 = vadd.xlane.f32.xlu0 %v192
        %v194 = vpop.xlane.xlu0 %193
        %v195 = vmul.f32 %v194, %v189
        %v196 = vadd.f32 %v195, 1e-05
        %v197 = vrsqrt.pop %v196
        %v198 = vmul.f32 %v191, %v197
        %v199 = vld [vmem:[%s1] sm:$0x1]
        %v201 = vlaneseq
        %v202 = vshrl.u32 %v201, 7
        %v203 = vsub.s32 0, %v202
        %v204 = vrot.slane %v199, %v203
        %v206 = vmul.f32 %v198, %v204
        %v207 = vld [vmem:[%s2] sm:$0x1]
        %v209 = vlaneseq
        %v210 = vshrl.u32 %v209, 7
        %v211 = vsub.s32 0, %v210
        %v212 = vrot.slane %v207, %v211
        %v214 = vadd.f32 %v206, %v212
        %215 = vst [vmem:[%s185] sm:$0xff] %v214
        %s216 = sand.u32 %s96, 1
        %s217 = scalar_lea.sflag [#allocation4], %s216
        %s218 = sand.u32 %s96, 1
        %s219 = smul.addr %s218, 8
        %s220 = scalar_lea.vmem [#allocation5], %s219
        // Predicated region
        $region37: #{tpu_custom_call.1} parent=31 // pred_check
          %p221 = pneg %p106
        $region38: #{tpu_custom_call.1} parent=31 // pred_check_branch
          %223 = sbr.rel (%p221) target = $region40
        $region39: #{tpu_custom_call.1} parent=31 // pred_region
          %s225 = ssub.s32 128, 128
          %226 = vsyncadd %s217, %s225
          %s227 = smul.addr %s20, 128
          %s228 = scalar_lea.hbm %s3, %s227
          %s230 = sshll.u32 %s220, 4
          %s231 = int_to_ptr.vmem [resolvable:$true] %s230
          %233 = dma.vmem_to_hbm [thread:$0]  %s231, 128, %s228, %s217
        $region40: #{tpu_custom_call.1} parent=31 // pred_fallthru
          _
      $region32: #{tpu_custom_call.1} parent=5 // pred_fallthru
        _
      %p234 = scmp.le.s32.totalorder 2, %s15
      // Predicated region
      $region41: #{tpu_custom_call.1} parent=5 // pred_check
        %p235 = pneg %p234
      $region42: #{tpu_custom_call.1} parent=5 // pred_check_branch
        %237 = sbr.rel (%p235) target = $region44
      $region43: #{tpu_custom_call.1} parent=5 // pred_region
        %s238 = ssub.s32 %s15, 2
        // Predicated region
        $region45: #{tpu_custom_call.1} parent=43 // pred_check
          %p239 = pneg %p112
        $region46: #{tpu_custom_call.1} parent=43 // pred_check_branch
          %241 = sbr.rel (%p239) target = $region48
        $region47: #{tpu_custom_call.1} parent=43 // pred_region
          %s242 = sand.u32 %s97, 1
          %s243 = scalar_lea.sflag [#allocation4], %s242
          %s244 = sand.u32 %s97, 1
          %s245 = smul.addr %s244, 8
          %s246 = scalar_lea.vmem [#allocation5], %s245
          %247 = dma.done %s243, 128
        $region48: #{tpu_custom_call.1} parent=43 // pred_fallthru
          _
      $region44: #{tpu_custom_call.1} parent=5 // pred_fallthru
        _
    $region6: #{tpu_custom_call.1} parent=1 // loop_footer
      %s19 = sadd.s32 1, %s15
    $region7: #{tpu_custom_call.1} parent=1 // loop_footer_branch
      %14 = sbr.rel target = $region3
    $region8: #{tpu_custom_call.1} parent=1 // loop_exit
      _
    %248 = vsyncpa [#allocation3], 1
    %s249 = scalar_lea.sflag [#allocation3], 1
    %250 = vsyncpa %s249, 1
    %251 = vsyncpa [#allocation4], 1
    %s252 = scalar_lea.sflag [#allocation4], 1
    %253 = vsyncpa %s252, 1

</llo_original>
